<compile_context>
chip_gen: v5e
topology: v5e:2x2
jax: 0.10.0
libtpu: 0.0.40
codegen_flags: <defaults>
</compile_context>

<pallas_src>
import math
import functools

import jax
import jax.numpy as jnp
from jax.experimental import pallas as pl
from jax.experimental.pallas import tpu as pltpu

_INV_SQRT2 = 1.0 / math.sqrt(2.0)
_SQRT_2_OVER_PI = math.sqrt(2.0 / math.pi)


# --------------------------------------------------------------------------------------
# helpers
# --------------------------------------------------------------------------------------
def _round_up(a, b):
    return ((a + b - 1) // b) * b


def _cdiv(a, b):
    return -(-a // b)


def _pick_tk(hh_p, target_tk):
    """Largest multiple of 128 that divides hh_p and is <= target_tk (>=128 always)."""
    units = hh_p // 128
    tgt = max(1, target_tk // 128)
    best = 1
    for d in range(1, units + 1):
        if units % d == 0 and d <= tgt:
            best = d
    return best * 128


def _default_vmem_limit():
    cap = 64 * 1024 * 1024
    try:
        cap = int(pltpu.get_tpu_info().vmem_capacity_bytes)
    except Exception:
        pass
    # leave headroom for Mosaic internal scratch / implicit double buffers
    return min((cap * 7) // 8, 112 * 1024 * 1024)


def _gelu_f32(h, approximate):
    if approximate:
        # tanh-approx GeLU -> EUP (frees VALU slots); not bit-exact with torch default.
        return 0.5 * h * (1.0 + jnp.tanh(_SQRT_2_OVER_PI * (h + 0.044715 * h * h * h)))
    # exact erf GeLU, matching torch.nn.functional.gelu default
    return 0.5 * h * (1.0 + jax.lax.erf(h * _INV_SQRT2))


# --------------------------------------------------------------------------------------
# kernels
# --------------------------------------------------------------------------------------
def _mlp_resident_kernel(x_ref, w1_ref, b1_ref, w2_ref, b2_ref, y_ref, *,
                         approximate_gelu=False):
    """Grid = (token_blocks,). Full W1/W2/b1/b2 stay VMEM-resident (constant index_map)."""
    h = jnp.dot(x_ref[...], w1_ref[...], preferred_element_type=jnp.float32)
    h = _gelu_f32(h + b1_ref[...].astype(jnp.float32), approximate_gelu)
    y = jnp.dot(h.astype(w2_ref.dtype), w2_ref[...], preferred_element_type=jnp.float32)
    y_ref[...] = (y + b2_ref[...].astype(jnp.float32)).astype(y_ref.dtype)


def _mlp_tiled_kernel(x_ref, w1_ref, b1_ref, w2_ref, b2_ref, y_ref, acc_ref, *,
                      approximate_gelu=False):
    """Grid = (token_blocks, hh_blocks). Partial fc2 products accumulated over hh."""
    k = pl.program_id(1)

    h = jnp.dot(x_ref[...], w1_ref[...], preferred_element_type=jnp.float32)
    h = _gelu_f32(h + b1_ref[...].astype(jnp.float32), approximate_gelu)
    part = jnp.dot(h.astype(w2_ref.dtype), w2_ref[...],
                   preferred_element_type=jnp.float32)

    @pl.when(k == 0)
    def _first():
        acc_ref[...] = part                 # overwrite: no zero-fill + RMW on step 0

    @pl.when(k > 0)
    def _rest():
        acc_ref[...] += part

    @pl.when(k == pl.num_programs(1) - 1)
    def _finalize():
        y_ref[...] = (acc_ref[...] + b2_ref[...].astype(jnp.float32)).astype(y_ref.dtype)


# --------------------------------------------------------------------------------------
# wrapper
# --------------------------------------------------------------------------------------
def prepare_params(w1_t, b1, w2_t, b2, *, block_k=512):
    """Pad parameters to lane-aligned shapes ONCE at init (hoisted out of per-call jit).

    w1_t: [hidden_in, hidden_hidden] (= fc1.weight.T), b1: [hidden_hidden]
    w2_t: [hidden_hidden, hidden_out] (= fc2.weight.T), b2: [hidden_out]
    """
    hidden_in, hh = w1_t.shape
    hh2, hidden_out = w2_t.shape
    assert hh2 == hh and b1.shape == (hh,) and b2.shape == (hidden_out,)

    hid_in_p = _round_up(hidden_in, 128)
    hid_out_p = _round_up(hidden_out, 128)
    hh_p = _round_up(hh, 128)
    tk = _pick_tk(hh_p, block_k)          # divides hh_p exactly -> near-zero pad waste

    w1_p = jnp.pad(w1_t, ((0, hid_in_p - hidden_in), (0, hh_p - hh)))
    b1_p = jnp.pad(b1, (0, hh_p - hh)).reshape(1, hh_p)
    w2_p = jnp.pad(w2_t, ((0, hh_p - hh), (0, hid_out_p - hidden_out)))
    b2_p = jnp.pad(b2, (0, hid_out_p - hidden_out)).reshape(1, hid_out_p)
    return (w1_p, b1_p, w2_p, b2_p), {"hidden_out": hidden_out, "tk": tk}


@functools.partial(
    jax.jit,
    static_argnames=("hidden_out", "tk", "block_rows", "ensure_two_token_blocks",
                     "vmem_limit_bytes", "weight_buffers", "approximate_gelu",
                     "force_path"))
def _fake_megatron_mlp_impl(x, w1_p, b1_p, w2_p, b2_p, *, hidden_out, tk,
                            block_rows, ensure_two_token_blocks, vmem_limit_bytes,
                            weight_buffers, approximate_gelu, force_path):
    orig_shape = x.shape
    hidden_in = orig_shape[-1]
    hid_in_p, hh_p = w1_p.shape
    hid_out_p = w2_p.shape[1]
    assert hid_in_p >= hidden_in and hh_p % tk == 0

    x2d = x.reshape(-1, hidden_in)
    n_tokens = x2d.shape[0]

    vmem_limit = vmem_limit_bytes if vmem_limit_bytes is not None else _default_vmem_limit()
    budget = (vmem_limit * 4) // 5

    wsize = jnp.dtype(w1_p.dtype).itemsize
    xsize = jnp.dtype(x.dtype).itemsize

    # --- token tile: as large as block_rows allows, sublane-aligned, but guarantee ---
    # --- >=2 blocks on the "parallel" axis so both v7x TensorCores get work.       ---
    bm = _round_up(min(block_rows, max(n_tokens, 1)), 8)
    if ensure_two_token_blocks:
        while bm > 8 and _cdiv(max(n_tokens, 1), bm) < 2:
            bm = _round_up(max(8, bm // 2), 8)

    weight_bytes = (hid_in_p * hh_p + hh_p * hid_out_p + hh_p + hid_out_p) * wsize

    def resident_vmem(bm_):
        # count weights x2 to stay safe w.r.t. Pallas' per-input double buffers
        return (2 * weight_bytes
                + 2 * bm_ * hid_in_p * xsize          # x tile, double buffered
                + 2 * bm_ * hid_out_p * xsize         # out tile, double buffered
                + bm_ * hh_p * (4 + wsize))           # f32 hidden + cast for fc2

    def tiled_vmem(bm_):
        return (2 * bm_ * hid_in_p * xsize
                + 2 * (hid_in_p * tk + tk * hid_out_p + tk + hid_out_p) * wsize
                + 2 * bm_ * hid_out_p * xsize
                + bm_ * hid_out_p * 4                 # f32 accumulator scratch
                + bm_ * tk * (4 + wsize))             # f32 hidden + cast for fc2

    if force_path == "resident":
        use_resident = True
    elif force_path == "tiled":
        use_resident = False
    else:
        use_resident = resident_vmem(bm) <= budget

    if not use_resident:
        # shrink the token tile until the streaming tile set fits the budget
        while bm > 8 and tiled_vmem(bm) > budget:
            bm = _round_up(max(8, bm // 2), 8)

    n_tok_p = _round_up(max(n_tokens, 1), bm)
    x_p = jnp.pad(x2d, ((0, n_tok_p - n_tokens), (0, hid_in_p - hidden_in)))

    if use_resident:
        grid = (n_tok_p // bm,)
        y_full = pl.pallas_call(
            functools.partial(_mlp_resident_kernel, approximate_gelu=approximate_gelu),
            out_shape=jax.ShapeDtypeStruct((n_tok_p, hid_out_p), x.dtype),
            grid_spec=pltpu.PrefetchScalarGridSpec(
                num_scalar_prefetch=0,
                grid=grid,
                in_specs=[
                    pl.BlockSpec((bm, hid_in_p), lambda i: (i, 0)),       # x tile
                    pl.BlockSpec((hid_in_p, hh_p), lambda i: (0, 0)),     # W1^T resident
                    pl.BlockSpec((1, hh_p), lambda i: (0, 0)),            # b1 resident
                    pl.BlockSpec((hh_p, hid_out_p), lambda i: (0, 0)),    # W2^T resident
                    pl.BlockSpec((1, hid_out_p), lambda i: (0, 0)),       # b2 resident
                ],
                out_specs=pl.BlockSpec((bm, hid_out_p), lambda i: (i, 0)),
            ),
            compiler_params=pltpu.CompilerParams(
                dimension_semantics=("parallel",),
                vmem_limit_bytes=vmem_limit,
            ),
        )(x_p, w1_p, b1_p, w2_p, b2_p)
    else:
        def wspec(shape, imap):
            if weight_buffers is not None and weight_buffers != 2:
                return pl.BlockSpec(shape, imap, pipeline_mode=pl.Buffered(weight_buffers))
            return pl.BlockSpec(shape, imap)

        grid = (n_tok_p // bm, hh_p // tk)
        y_full = pl.pallas_call(
            functools.partial(_mlp_tiled_kernel, approximate_gelu=approximate_gelu),
            out_shape=jax.ShapeDtypeStruct((n_tok_p, hid_out_p), x.dtype),
            grid_spec=pltpu.PrefetchScalarGridSpec(
                num_scalar_prefetch=0,
                grid=grid,
                in_specs=[
                    pl.BlockSpec((bm, hid_in_p), lambda i, k: (i, 0)),    # x tile
                    wspec((hid_in_p, tk), lambda i, k: (0, k)),           # W1^T hh-tile
                    pl.BlockSpec((1, tk), lambda i, k: (0, k)),           # b1 hh-tile
                    wspec((tk, hid_out_p), lambda i, k: (k, 0)),          # W2^T hh-tile
                    pl.BlockSpec((1, hid_out_p), lambda i, k: (0, 0)),    # b2 invariant
                ],
                out_specs=pl.BlockSpec((bm, hid_out_p), lambda i, k: (i, 0)),
                scratch_shapes=[pltpu.VMEM((bm, hid_out_p), jnp.float32)],
            ),
            compiler_params=pltpu.CompilerParams(
                dimension_semantics=("parallel", "arbitrary"),
                vmem_limit_bytes=vmem_limit,
            ),
        )(x_p, w1_p, b1_p, w2_p, b2_p)

    y = y_full[:n_tokens, :hidden_out].reshape(orig_shape[:-1] + (hidden_out,))
    # Second module output: torch.zeros_like(fc2 output) — produced here, never written
    # through the kernel/HBM pipeline.
    return y, jnp.zeros_like(y)


def fake_megatron_mlp(x, padded_params, meta, *, block_rows=512,
                      ensure_two_token_blocks=True, vmem_limit_bytes=None,
                      weight_buffers=2, approximate_gelu=False, force_path=None):
    """x: [..., hidden_in]. Returns (y, zeros_like(y)) matching _FakeMegatronMLP."""
    w1_p, b1_p, w2_p, b2_p = padded_params
    return _fake_megatron_mlp_impl(
        x, w1_p, b1_p, w2_p, b2_p,
        hidden_out=meta["hidden_out"], tk=meta["tk"],
        block_rows=block_rows, ensure_two_token_blocks=ensure_two_token_blocks,
        vmem_limit_bytes=vmem_limit_bytes, weight_buffers=weight_buffers,
        approximate_gelu=approximate_gelu, force_path=force_path)


# --------------------------------------------------------------------------------------
# demo / correctness checks
# --------------------------------------------------------------------------------------
def _init_linear_params(key, in_features, out_features, dtype=jnp.float32):
    """Deterministic init mimicking nn.Linear defaults; weight stored transposed."""
    kw, kb = jax.random.split(key)
    bound = 1.0 / math.sqrt(in_features)
    w_t = jax.random.uniform(kw, (in_features, out_features), dtype,
                             minval=-bound, maxval=bound)
    b = jax.random.uniform(kb, (out_features,), dtype, minval=-bound, maxval=bound)
    return w_t, b


def _ref_forward(x, w1_t, b1, w2_t, b2):
    h = x.reshape(-1, x.shape[-1]) @ w1_t + b1
    h = 0.5 * h * (1.0 + jax.lax.erf(h * _INV_SQRT2))
    y = h @ w2_t + b2
    return y.reshape(x.shape[:-1] + (w2_t.shape[1],))


if __name__ == "__main__":
    # args.hidden_size = 32, args.hidden_hidden_size = 64, tokens = batch*seq = 2*8
    hidden_size = 32
    hidden_hidden_size = 64
    batch, seq = 2, 8

    key = jax.random.PRNGKey(0)
    k_x, k_fc1, k_fc2, k_x2, k_fc3, k_fc4 = jax.random.split(key, 6)

    x = jax.random.normal(k_x, (batch, seq, hidden_size), jnp.float32)
    w1_t, b1 = _init_linear_params(k_fc1, hidden_size, hidden_hidden_size)
    w2_t, b2 = _init_linear_params(k_fc2, hidden_hidden_size, hidden_size)

    # ---- f32 run (resident-weights path; exact parity with the torch module) ----
    padded, meta = prepare_params(w1_t, b1, w2_t, b2)
    y, z = fake_megatron_mlp(x, padded, meta)
    jax.block_until_ready((y, z))
    y_ref = _ref_forward(x, w1_t, b1, w2_t, b2)
    assert jnp.allclose(y, y_ref, atol=1e-5, rtol=1e-5)
    assert jnp.all(z == 0.0)

    # ---- bf16 weights/activations (production path: native MXU, f32 accumulation) ----
    padded16, meta16 = prepare_params(w1_t.astype(jnp.bfloat16), b1.astype(jnp.bfloat16),
                                      w2_t.astype(jnp.bfloat16), b2.astype(jnp.bfloat16))
    y16, z16 = fake_megatron_mlp(x.astype(jnp.bfloat16), padded16, meta16)
    jax.block_until_ready((y16, z16))
    assert jnp.allclose(y16.astype(jnp.float32), y_ref, atol=1e-1, rtol=1e-1)
    assert jnp.all(z16 == 0.0)

    # ---- force the tiled (hh-accumulating) path with multiple k-steps ----
    hs2, hh2, b2_, s2 = 128, 512, 4, 16
    x_b = jax.random.normal(k_x2, (b2_, s2, hs2), jnp.float32)
    w1b_t, b1b = _init_linear_params(k_fc3, hs2, hh2)
    w2b_t, b2b = _init_linear_params(k_fc4, hh2, hs2)
    padded_b, meta_b = prepare_params(w1b_t, b1b, w2b_t, b2b, block_k=128)  # 4 hh tiles
    yb, zb = fake_megatron_mlp(x_b, padded_b, meta_b, force_path="tiled")
    jax.block_until_ready((yb, zb))
    yb_ref = _ref_forward(x_b, w1b_t, b1b, w2b_t, b2b)
    assert jnp.allclose(yb, yb_ref, atol=1e-4, rtol=1e-4)
    assert jnp.all(zb == 0.0)

    print("KERNEL_OK")
</pallas_src>

<mosaic_0001>
module attributes {stable_mosaic.version = 11 : i64} {
  func.func @_mlp_resident_kernel(%arg0: i32, %arg1: memref<8x128xf32, #tpu.memory_space<vmem>>, %arg2: memref<128x128xf32, #tpu.memory_space<vmem>>, %arg3: memref<1x128xf32, #tpu.memory_space<vmem>>, %arg4: memref<128x128xf32, #tpu.memory_space<vmem>>, %arg5: memref<1x128xf32, #tpu.memory_space<vmem>>, %arg6: memref<8x128xf32, #tpu.memory_space<vmem>>) attributes {dimension_semantics = [#tpu.dimension_semantics<parallel>], iteration_bounds = array<i64: 2>, scalar_prefetch = 0 : i64, scratch_operands = 0 : i64, tpu.core_type = #tpu.core_type<tc>, window_params = [{transform_indices = @transform_0, window_bounds = array<i64: 8, 128>}, {pipeline_mode = #tpu.pipeline_mode<synchronous>, transform_indices = @transform_1, window_bounds = array<i64: 128, 128>}, {pipeline_mode = #tpu.pipeline_mode<synchronous>, transform_indices = @transform_2, window_bounds = array<i64: 1, 128>}, {pipeline_mode = #tpu.pipeline_mode<synchronous>, transform_indices = @transform_3, window_bounds = array<i64: 128, 128>}, {pipeline_mode = #tpu.pipeline_mode<synchronous>, transform_indices = @transform_4, window_bounds = array<i64: 1, 128>}, {transform_indices = @transform_5, window_bounds = array<i64: 8, 128>}]} {
    %c0 = arith.constant 0 : index
    %c0_0 = arith.constant 0 : index
    %0 = vector.load %arg1[%c0, %c0_0] : memref<8x128xf32, #tpu.memory_space<vmem>>, vector<8x128xf32>
    %c0_1 = arith.constant 0 : index
    %c0_2 = arith.constant 0 : index
    %1 = vector.load %arg2[%c0_1, %c0_2] : memref<128x128xf32, #tpu.memory_space<vmem>>, vector<128x128xf32>
    %cst = arith.constant dense<0.000000e+00> : vector<8x128xf32>
    %2 = tpu.matmul %0, %1, %cst {dimension_numbers = #tpu.dot_dimension_numbers<[1], [0], [0], [1], [0, 0, 1, 1], [], []>} : vector<8x128xf32>, vector<128x128xf32>, vector<8x128xf32> -> vector<8x128xf32>
    %c0_3 = arith.constant 0 : index
    %c0_4 = arith.constant 0 : index
    %3 = vector.load %arg3[%c0_3, %c0_4] : memref<1x128xf32, #tpu.memory_space<vmem>>, vector<1x128xf32>
    %4 = vector.broadcast %3 : vector<1x128xf32> to vector<8x128xf32>
    %5 = arith.addf %2, %4 : vector<8x128xf32>
    %cst_5 = arith.constant 5.000000e-01 : f32
    %6 = vector.broadcast %cst_5 : f32 to vector<8x128xf32>
    %7 = arith.mulf %6, %5 : vector<8x128xf32>
    %cst_6 = arith.constant 0.707106769 : f32
    %8 = vector.broadcast %cst_6 : f32 to vector<8x128xf32>
    %9 = arith.mulf %5, %8 : vector<8x128xf32>
    %10 = math.erf %9 : vector<8x128xf32>
    %cst_7 = arith.constant 1.000000e+00 : f32
    %11 = vector.broadcast %cst_7 : f32 to vector<8x128xf32>
    %12 = arith.addf %11, %10 : vector<8x128xf32>
    %13 = arith.mulf %7, %12 : vector<8x128xf32>
    %c0_8 = arith.constant 0 : index
    %c0_9 = arith.constant 0 : index
    %14 = vector.load %arg4[%c0_8, %c0_9] : memref<128x128xf32, #tpu.memory_space<vmem>>, vector<128x128xf32>
    %cst_10 = arith.constant dense<0.000000e+00> : vector<8x128xf32>
    %15 = tpu.matmul %13, %14, %cst_10 {dimension_numbers = #tpu.dot_dimension_numbers<[1], [0], [0], [1], [0, 0, 1, 1], [], []>} : vector<8x128xf32>, vector<128x128xf32>, vector<8x128xf32> -> vector<8x128xf32>
    %c0_11 = arith.constant 0 : index
    %c0_12 = arith.constant 0 : index
    %16 = vector.load %arg5[%c0_11, %c0_12] : memref<1x128xf32, #tpu.memory_space<vmem>>, vector<1x128xf32>
    %17 = vector.broadcast %16 : vector<1x128xf32> to vector<8x128xf32>
    %18 = arith.addf %15, %17 : vector<8x128xf32>
    %c0_13 = arith.constant 0 : index
    %c0_14 = arith.constant 0 : index
    %19 = vector.load %arg6[%c0_13, %c0_14] : memref<8x128xf32, #tpu.memory_space<vmem>>, vector<8x128xf32>
    tpu.vector_store %arg6[%c0_13, %c0_14], %18 {strides = array<i32>} : memref<8x128xf32, #tpu.memory_space<vmem>>, vector<8x128xf32>,
    return
  }
  func.func @transform_0(%arg0: i32) -> (i32, i32) {
    %c0_i32 = arith.constant 0 : i32
    %c0_i32_0 = arith.constant 0 : i32
    return %arg0, %c0_i32 : i32, i32
  }
  func.func @transform_1(%arg0: i32) -> (i32, i32) {
    %c0_i32 = arith.constant 0 : i32
    %c0_i32_0 = arith.constant 0 : i32
    %c0_i32_1 = arith.constant 0 : i32
    return %c0_i32, %c0_i32_0 : i32, i32
  }
  func.func @transform_2(%arg0: i32) -> (i32, i32) {
    %c0_i32 = arith.constant 0 : i32
    %c0_i32_0 = arith.constant 0 : i32
    %c0_i32_1 = arith.constant 0 : i32
    return %c0_i32, %c0_i32_0 : i32, i32
  }
  func.func @transform_3(%arg0: i32) -> (i32, i32) {
    %c0_i32 = arith.constant 0 : i32
    %c0_i32_0 = arith.constant 0 : i32
    %c0_i32_1 = arith.constant 0 : i32
    return %c0_i32, %c0_i32_0 : i32, i32
  }
  func.func @transform_4(%arg0: i32) -> (i32, i32) {
    %c0_i32 = arith.constant 0 : i32
    %c0_i32_0 = arith.constant 0 : i32
    %c0_i32_1 = arith.constant 0 : i32
    return %c0_i32, %c0_i32_0 : i32, i32
  }
  func.func @transform_5(%arg0: i32) -> (i32, i32) {
    %c0_i32 = arith.constant 0 : i32
    %c0_i32_0 = arith.constant 0 : i32
    return %arg0, %c0_i32 : i32, i32
  }
}

</mosaic_0001>

<llo_original>
// kernel: _fake_megatron_mlp_impl.1
$region0: #{_fake_megatron_mlp_impl.1}
  #allocation0 [shape = 'u32[]', space=smem, size = 0x4, offset = 0x4, fixed_abs, tag = 'smem constant byte address 0x4 - core index']
  #allocation1 [shape = 'u32[72,128]{1,0:T(1,128)}', space=vmem, size = 0x9000, scoped, tag = 'internal scratch']
  %s0 = inlined_call_operand.vmem [shape: f32[16,128], index: 0, kind: input, shape index: {}]
  %s1 = inlined_call_operand.hbm [shape: f32[128,128], index: 1, kind: input, shape index: {}]
  %s2 = inlined_call_operand.vmem [shape: f32[1,128], index: 2, kind: input, shape index: {}]
  %s3 = inlined_call_operand.hbm [shape: f32[128,128], index: 3, kind: input, shape index: {}]
  %s4 = inlined_call_operand.vmem [shape: f32[1,128], index: 4, kind: input, shape index: {}]
  %s5 = inlined_call_operand.vmem [shape: f32[16,128], index: 5, kind: output, shape index: {}]
  %s6 = sld [smem:[#allocation0]]
  $region61: #{_fake_megatron_mlp_impl.1} parent=0
    _
  %s8 = ssub.s32 1, %s6
  %s9 = scalar_select 0, %s8, %s6
  $region1: #{_fake_megatron_mlp_impl.1} parent=0
    #allocation2 [shape = 'u8[65536]{0}', space=vmem, size = 0x10000, scoped, tag = 'input window, operand 1, single buffered']
    #allocation3 [shape = 's32[2]{0}', space=sflag, size = 0x8, scoped, tag = 'scoped memory for _fake_megatron_mlp_impl.1']
    #allocation4 [shape = 'u8[65536]{0}', space=vmem, size = 0x10000, scoped, tag = 'input window, operand 3, single buffered']
    #allocation5 [shape = 's32[1]{0}', space=sflag, size = 0x4, scoped, tag = 'scoped memory for _fake_megatron_mlp_impl.1']
    %10 = vsyncpa [#allocation3], 0
    %11 = vsyncpa [#allocation5], 0
    loop: start=0, step=1, limit=4
    $region2: #{_fake_megatron_mlp_impl.1} parent=1 // loop_pre_header
      _
    $region3: #{_fake_megatron_mlp_impl.1} parent=1 // loop_header
      %s13 = sphi 0, %s17
      %p14 = scmp.ge.s32.totalorder %s13, 4
      %s23 = sphi 0, %s25
      %s26 = sphi 0, %s23
      %s27 = sphi 0, %s26
      %s43 = sphi 0, %s27
      %s47 = sphi 0, %s47
      %s49 = sphi 0, %s47
      %s50 = sphi 0, %s49
      %s64 = sphi 0, %s50
      %s68 = sphi 0, %s68
      %s70 = sphi 0, %s68
      %s71 = sphi 0, %s70
      %s85 = sphi 0, %s71
      %s89 = sphi 0, %s89
      %s91 = sphi 0, %s89
      %s92 = sphi 0, %s91
      %s106 = sphi 0, %s92
      %s110 = sphi 0, %s110
      %s112 = sphi 0, %s110
      %s113 = sphi 0, %s112
      %s127 = sphi 0, %s113
      %s133 = sphi 0, %s135
      %s136 = sphi 0, %s133
      %s137 = sphi 0, %s136
      %s153 = sphi 0, %s137
    $region4: #{_fake_megatron_mlp_impl.1} parent=1 // loop_header_branch
      %16 = sbr.rel (%p14) target = $region8
    $region5: #{_fake_megatron_mlp_impl.1} parent=1 // loop_body
      %s18 = ssub.s32 %s13, 1
      %s19 = ssub.s32 %s13, 2
      %s20 = sadd.s32 %s13, 1
      %s21 = ssub.s32 %s13, %s20
      %p22 = scmp.eq.s32.totalorder %s21, 0
      %s24 = sadd.s32 %s23, 1
      %s25 = scalar_select %p22, %s23, %s24
      %p28 = pneg %p22
      %p29 = scmp.eq.s32.totalorder %s13, 1
      %p30 = por %p28, %p29
      %p31 = scmp.ne.s32.totalorder %s23, %s26
      %p32 = scmp.eq.s32.totalorder %s13, 0
      %p33 = por %p31, %p32
      %p34 = scmp.ne.s32.totalorder %s23, %s26
      %p35 = scmp.eq.s32.totalorder %s18, 1
      %p36 = por %p34, %p35
      %p37 = scmp.ne.s32.totalorder %s26, %s27
      %p38 = scmp.eq.s32.totalorder %s18, 0
      %p39 = por %p37, %p38
      %p40 = scmp.ne.s32.totalorder %s26, %s27
      %p41 = scmp.eq.s32.totalorder %s19, 1
      %p42 = por %p40, %p41
      %p44 = scmp.ne.s32.totalorder %s27, %s43
      %p45 = scmp.eq.s32.totalorder %s19, 0
      %p46 = por %p44, %p45
      %s48 = sadd.s32 %s47, 1
      %p51 = scmp.eq.s32.totalorder %s13, 1
      %p52 = scmp.ne.s32.totalorder %s47, %s49
      %p53 = scmp.eq.s32.totalorder %s13, 0
      %p54 = por %p52, %p53
      %p55 = scmp.ne.s32.totalorder %s47, %s49
      %p56 = scmp.eq.s32.totalorder %s18, 1
      %p57 = por %p55, %p56
      %p58 = scmp.ne.s32.totalorder %s49, %s50
      %p59 = scmp.eq.s32.totalorder %s18, 0
      %p60 = por %p58, %p59
      %p61 = scmp.ne.s32.totalorder %s49, %s50
      %p62 = scmp.eq.s32.totalorder %s19, 1
      %p63 = por %p61, %p62
      %p65 = scmp.ne.s32.totalorder %s50, %s64
      %p66 = scmp.eq.s32.totalorder %s19, 0
      %p67 = por %p65, %p66
      %s69 = sadd.s32 %s68, 1
      %p72 = scmp.eq.s32.totalorder %s13, 1
      %p73 = scmp.ne.s32.totalorder %s68, %s70
      %p74 = scmp.eq.s32.totalorder %s13, 0
      %p75 = por %p73, %p74
      %p76 = scmp.ne.s32.totalorder %s68, %s70
      %p77 = scmp.eq.s32.totalorder %s18, 1
      %p78 = por %p76, %p77
      %p79 = scmp.ne.s32.totalorder %s70, %s71
      %p80 = scmp.eq.s32.totalorder %s18, 0
      %p81 = por %p79, %p80
      %p82 = scmp.ne.s32.totalorder %s70, %s71
      %p83 = scmp.eq.s32.totalorder %s19, 1
      %p84 = por %p82, %p83
      %p86 = scmp.ne.s32.totalorder %s71, %s85
      %p87 = scmp.eq.s32.totalorder %s19, 0
      %p88 = por %p86, %p87
      %s90 = sadd.s32 %s89, 1
      %p93 = scmp.eq.s32.totalorder %s13, 1
      %p94 = scmp.ne.s32.totalorder %s89, %s91
      %p95 = scmp.eq.s32.totalorder %s13, 0
      %p96 = por %p94, %p95
      %p97 = scmp.ne.s32.totalorder %s89, %s91
      %p98 = scmp.eq.s32.totalorder %s18, 1
      %p99 = por %p97, %p98
      %p100 = scmp.ne.s32.totalorder %s91, %s92
      %p101 = scmp.eq.s32.totalorder %s18, 0
      %p102 = por %p100, %p101
      %p103 = scmp.ne.s32.totalorder %s91, %s92
      %p104 = scmp.eq.s32.totalorder %s19, 1
      %p105 = por %p103, %p104
      %p107 = scmp.ne.s32.totalorder %s92, %s106
      %p108 = scmp.eq.s32.totalorder %s19, 0
      %p109 = por %p107, %p108
      %s111 = sadd.s32 %s110, 1
      %p114 = scmp.eq.s32.totalorder %s13, 1
      %p115 = scmp.ne.s32.totalorder %s110, %s112
      %p116 = scmp.eq.s32.totalorder %s13, 0
      %p117 = por %p115, %p116
      %p118 = scmp.ne.s32.totalorder %s110, %s112
      %p119 = scmp.eq.s32.totalorder %s18, 1
      %p120 = por %p118, %p119
      %p121 = scmp.ne.s32.totalorder %s112, %s113
      %p122 = scmp.eq.s32.totalorder %s18, 0
      %p123 = por %p121, %p122
      %p124 = scmp.ne.s32.totalorder %s112, %s113
      %p125 = scmp.eq.s32.totalorder %s19, 1
      %p126 = por %p124, %p125
      %p128 = scmp.ne.s32.totalorder %s113, %s127
      %p129 = scmp.eq.s32.totalorder %s19, 0
      %p130 = por %p128, %p129
      %s131 = ssub.s32 %s13, %s20
      %p132 = scmp.eq.s32.totalorder %s131, 0
      %s134 = sadd.s32 %s133, 1
      %s135 = scalar_select %p132, %s133, %s134
      %p138 = pneg %p132
      %p139 = scmp.eq.s32.totalorder %s13, 1
      %p140 = por %p138, %p139
      %p141 = scmp.ne.s32.totalorder %s133, %s136
      %p142 = scmp.eq.s32.totalorder %s13, 0
      %p143 = por %p141, %p142
      %p144 = scmp.ne.s32.totalorder %s133, %s136
      %p145 = scmp.eq.s32.totalorder %s18, 1
      %p146 = por %p144, %p145
      %p147 = scmp.ne.s32.totalorder %s136, %s137
      %p148 = scmp.eq.s32.totalorder %s18, 0
      %p149 = por %p147, %p148
      %p150 = scmp.ne.s32.totalorder %s136, %s137
      %p151 = scmp.eq.s32.totalorder %s19, 1
      %p152 = por %p150, %p151
      %p154 = scmp.ne.s32.totalorder %s137, %s153
      %p155 = scmp.eq.s32.totalorder %s19, 0
      %p156 = por %p154, %p155
      %p157 = scmp.le.s32.totalorder 1, %s13
      %p158 = scmp.lt.s32.totalorder %s13, 3
      %p159 = pnand %p157, %p158
      %p160 = pneg %p159
      // Predicated region
      $region9: #{_fake_megatron_mlp_impl.1} parent=5 // pred_check
        _
      $region10: #{_fake_megatron_mlp_impl.1} parent=5 // pred_check_branch
        %162 = sbr.rel (%p159) target = $region12
      $region11: #{_fake_megatron_mlp_impl.1} parent=5 // pred_region
        %s163 = ssub.s32 %s13, 1
        // Predicated region
        $region13: #{_fake_megatron_mlp_impl.1} parent=11 // pred_check
          %p164 = pneg %p60
        $region14: #{_fake_megatron_mlp_impl.1} parent=11 // pred_check_branch
          %166 = sbr.rel (%p164) target = $region16
        $region15: #{_fake_megatron_mlp_impl.1} parent=11 // pred_region
          %168 = vsyncadd [#allocation3], 0
          %s169 = sshll.u32 %s1, 4
          %s170 = int_to_ptr.hbm [resolvable:$true] %s169
          %s171 = sshll.u32 [#allocation2], 4
          %s172 = int_to_ptr.vmem [resolvable:$true] %s171
          %177 = dma.hbm_to_vmem [thread:$0]  %s170, 2048, %s172, [#allocation3], 128, 128, 8
        $region16: #{_fake_megatron_mlp_impl.1} parent=11 // pred_fallthru
          _
        // Predicated region
        $region17: #{_fake_megatron_mlp_impl.1} parent=11 // pred_check
          %p178 = pneg %p81
        $region18: #{_fake_megatron_mlp_impl.1} parent=11 // pred_check_branch
          %180 = sbr.rel (%p178) target = $region20
        $region19: #{_fake_megatron_mlp_impl.1} parent=11 // pred_region
          _
        $region20: #{_fake_megatron_mlp_impl.1} parent=11 // pred_fallthru
          _
        // Predicated region
        $region21: #{_fake_megatron_mlp_impl.1} parent=11 // pred_check
          %p181 = pneg %p102
        $region22: #{_fake_megatron_mlp_impl.1} parent=11 // pred_check_branch
          %183 = sbr.rel (%p181) target = $region24
        $region23: #{_fake_megatron_mlp_impl.1} parent=11 // pred_region
          %185 = vsyncadd [#allocation5], 0
          %s186 = sshll.u32 %s3, 4
          %s187 = int_to_ptr.hbm [resolvable:$true] %s186
          %s188 = sshll.u32 [#allocation4], 4
          %s189 = int_to_ptr.vmem [resolvable:$true] %s188
          %194 = dma.hbm_to_vmem [thread:$0]  %s187, 2048, %s189, [#allocation5], 128, 128, 8
        $region24: #{_fake_megatron_mlp_impl.1} parent=11 // pred_fallthru
          _
        // Predicated region
        $region25: #{_fake_megatron_mlp_impl.1} parent=11 // pred_check
          %p195 = pneg %p123
        $region26: #{_fake_megatron_mlp_impl.1} parent=11 // pred_check_branch
          %197 = sbr.rel (%p195) target = $region28
        $region27: #{_fake_megatron_mlp_impl.1} parent=11 // pred_region
          _
        $region28: #{_fake_megatron_mlp_impl.1} parent=11 // pred_fallthru
          _
      $region12: #{_fake_megatron_mlp_impl.1} parent=5 // pred_fallthru
        _
      %p198 = scmp.lt.s32.totalorder %s13, 2
      // Predicated region
      $region29: #{_fake_megatron_mlp_impl.1} parent=5 // pred_check
        %p199 = pneg %p198
      $region30: #{_fake_megatron_mlp_impl.1} parent=5 // pred_check_branch
        %201 = sbr.rel (%p199) target = $region32
      $region31: #{_fake_megatron_mlp_impl.1} parent=5 // pred_region
        // Predicated region
        $region33: #{_fake_megatron_mlp_impl.1} parent=31 // pred_check
          %p202 = pneg %p33
        $region34: #{_fake_megatron_mlp_impl.1} parent=31 // pred_check_branch
          %204 = sbr.rel (%p202) target = $region36
        $region35: #{_fake_megatron_mlp_impl.1} parent=31 // pred_region
          %p205 = scmp.lt.s32.totalorder %s13, 1
          %s206 = scalar_select %p205, %s13, 1
          %s207 = smul.addr %s206, 8
          %s208 = scalar_lea.vmem %s0, %s207
        $region36: #{_fake_megatron_mlp_impl.1} parent=31 // pred_fallthru
          _
      $region32: #{_fake_megatron_mlp_impl.1} parent=5 // pred_fallthru
        _
      %p209 = scmp.le.s32.totalorder 1, %s13
      %p210 = scmp.lt.s32.totalorder %s13, 3
      %p211 = pnand %p209, %p210
      %p212 = pneg %p211
      // Predicated region
      $region37: #{_fake_megatron_mlp_impl.1} parent=5 // pred_check
        _
      $region38: #{_fake_megatron_mlp_impl.1} parent=5 // pred_check_branch
        %214 = sbr.rel (%p211) target = $region40
      $region39: #{_fake_megatron_mlp_impl.1} parent=5 // pred_region
        %s215 = ssub.s32 %s13, 1
        // Predicated region
        $region41: #{_fake_megatron_mlp_impl.1} parent=39 // pred_check
          %p216 = pneg %p60
        $region42: #{_fake_megatron_mlp_impl.1} parent=39 // pred_check_branch
          %218 = sbr.rel (%p216) target = $region44
        $region43: #{_fake_megatron_mlp_impl.1} parent=39 // pred_region
          %220 = dma.done [#allocation3], 2048
        $region44: #{_fake_megatron_mlp_impl.1} parent=39 // pred_fallthru
          _
        // Predicated region
        $region45: #{_fake_megatron_mlp_impl.1} parent=39 // pred_check
          %p221 = pneg %p102
        $region46: #{_fake_megatron_mlp_impl.1} parent=39 // pred_check_branch
          %223 = sbr.rel (%p221) target = $region48
        $region47: #{_fake_megatron_mlp_impl.1} parent=39 // pred_region
          %225 = dma.done [#allocation5], 2048
        $region48: #{_fake_megatron_mlp_impl.1} parent=39 // pred_fallthru
          _
        %p226 = scmp.lt.s32.totalorder %s18, 1
        %s227 = scalar_select %p226, %s18, 1
        %s228 = smul.addr %s227, 8
        %s229 = scalar_lea.vmem %s0, %s228
        %p230 = pneg %p39
        %p231 = pneg %p36
        %p232 = pneg %p60
        %p233 = pneg %p57
        %p234 = pneg %p81
        %p235 = pneg %p78
        %p236 = pneg %p102
        %p237 = pneg %p99
        %p238 = pneg %p123
        %p239 = pneg %p120
        %p240 = pneg %p149
        %p241 = pneg %p146
        %p242 = scmp.lt.s32.totalorder %s18, 1
        %s243 = scalar_select %p242, %s18, 1
        %s244 = smul.addr %s243, 8
        %s245 = scalar_lea.vmem %s5, %s244
        %p246 = scmp.lt.s32.totalorder %s18, 1
        %s247 = scalar_select %p246, %s18, 1
        %s248 = smul.addr %s247, 8
        %s249 = scalar_lea.vmem %s0, %s248
        %p250 = scmp.lt.s32.totalorder %s18, 1
        %s251 = scalar_select %p250, %s18, 1
        %s252 = smul.addr %s251, 8
        %s253 = scalar_lea.vmem %s5, %s252
        %v254 = vld [vmem:[%s249] sm:$0xff]
        %v255 = vld [vmem:[#allocation2] sm:$0xff]
        %v256 = vld [vmem:[#allocation2 + $0x8] sm:$0xff]
        %v257 = vld [vmem:[#allocation2 + $0x10] sm:$0xff]
        %v258 = vld [vmem:[#allocation2 + $0x18] sm:$0xff]
        %v259 = vld [vmem:[#allocation2 + $0x20] sm:$0xff]
        %v260 = vld [vmem:[#allocation2 + $0x28] sm:$0xff]
        %v261 = vld [vmem:[#allocation2 + $0x30] sm:$0xff]
        %v262 = vld [vmem:[#allocation2 + $0x38] sm:$0xff]
        %v263 = vld [vmem:[#allocation2 + $0x40] sm:$0xff]
        %v264 = vld [vmem:[#allocation2 + $0x48] sm:$0xff]
        %v265 = vld [vmem:[#allocation2 + $0x50] sm:$0xff]
        %v266 = vld [vmem:[#allocation2 + $0x58] sm:$0xff]
        %v267 = vld [vmem:[#allocation2 + $0x60] sm:$0xff]
        %v268 = vld [vmem:[#allocation2 + $0x68] sm:$0xff]
        %v269 = vld [vmem:[#allocation2 + $0x70] sm:$0xff]
        %v270 = vld [vmem:[#allocation2 + $0x78] sm:$0xff]
        %v271 = vld [vmem:[%s2] sm:$0x1]
        %v273 = vperm.slane %v271, 0
        %275 = vmatpush.msra.mxu0 %v270
        %276 = vmatpush.msra.mxu0 %v269
        %277 = vmatpush.msra.mxu0 %v268
        %278 = vmatpush.msra.mxu0 %v267
        %279 = vmatpush.msra.mxu0 %v266
        %280 = vmatpush.msra.mxu0 %v265
        %281 = vmatpush.msra.mxu0 %v264
        %282 = vmatpush.msra.mxu0 %v263
        %283 = vmatpush.msra.mxu0 %v262
        %284 = vmatpush.msra.mxu0 %v261
        %285 = vmatpush.msra.mxu0 %v260
        %286 = vmatpush.msra.mxu0 %v259
        %287 = vmatpush.msra.mxu0 %v258
        %288 = vmatpush.msra.mxu0 %v257
        %289 = vmatpush.msra.mxu0 %v256
        %290 = vmatpush.msra.mxu0 %v255
        %291 = vmatmul.f32.gmra.mxu0 %v254
        %v292 = vpop.f32.mrf.mxu0
        %v293 = vadd.f32 %v273, %v292
        %294 = vdwg.mxu0
        %v295 = vmul.f32 %v293, 0.5
        %v296 = vmul.f32 %v293, 0.70710677
        %v297 = vmul.f32 %v296, %v296
        %v298 = vmin.f32 16.0, %v297
        %v299 = vmul.f32 %v298, 2.1237322e-06
        %v300 = vadd.f32 %v299, 0.00028619796
        %v301 = vmul.f32 %v298, %v300
        %v302 = vadd.f32 %v301, 0.0036580483
        %v303 = vmul.f32 %v298, %v302
        %v304 = vadd.f32 %v303, 0.05243302
        %v305 = vmul.f32 %v298, %v304
        %v306 = vadd.f32 %v305, 0.18741608
        %v307 = vmul.f32 %v298, %v306
        %v308 = vadd.f32 %v307, 1.1283791
        %v309 = vmul.f32 %v296, %v308
        %v310 = vmul.f32 %v298, 3.8918573e-05
        %v311 = vadd.f32 %v310, 0.001143296
        %v312 = vmul.f32 %v298, %v311
        %v313 = vadd.f32 %v312, 0.014752088
        %v314 = vmul.f32 %v298, %v313
        %v315 = vadd.f32 %v314, 0.112945676
        %v316 = vmul.f32 %v298, %v315
        %v317 = vadd.f32 %v316, 0.4994258
        %v318 = vmul.f32 %v298, %v317
        %v319 = vadd.f32 %v318, 1.0
        %v320 = vrcp.pop %v319
        %v321 = vmul.f32 %v319, %v320
        %v322 = vsub.f32 1.0, %v321
        %v323 = vmul.f32 %v320, %v322
        %v324 = vadd.f32 %v320, %v323
        %vm325 = vweird.f32 %v319
        %vm326 = vweird.f32 %v320
        %vm327 = vmor %vm325, %vm326
        %v328 = vsel %vm327, %v320, %v324
        %v329 = vand.u32 2147483647, %v319
        %vm330 = vcmp.eq.f32.partialorder %v329, 8.507059e+37
        %v331 = vand.u32 %v319, 2147483648
        %v332 = vor.u32 1.1754944e-38, %v331
        %v333 = vsel %vm330, %v332, %v328
        %v334 = vmul.f32 %v309, %v333
        %v335 = vmin.f32 %v334, 1.0
        %v336 = vmax.f32 %v335, -1.0
        %v337 = vadd.f32 %v336, 1.0
        %v338 = vmul.f32 %v295, %v337
        %v339 = vld [vmem:[#allocation4] sm:$0xff]
        %v340 = vld [vmem:[#allocation4 + $0x8] sm:$0xff]
        %v341 = vld [vmem:[#allocation4 + $0x10] sm:$0xff]
        %v342 = vld [vmem:[#allocation4 + $0x18] sm:$0xff]
        %v343 = vld [vmem:[#allocation4 + $0x20] sm:$0xff]
        %v344 = vld [vmem:[#allocation4 + $0x28] sm:$0xff]
        %v345 = vld [vmem:[#allocation4 + $0x30] sm:$0xff]
        %v346 = vld [vmem:[#allocation4 + $0x38] sm:$0xff]
        %v347 = vld [vmem:[#allocation4 + $0x40] sm:$0xff]
        %v348 = vld [vmem:[#allocation4 + $0x48] sm:$0xff]
        %v349 = vld [vmem:[#allocation4 + $0x50] sm:$0xff]
        %v350 = vld [vmem:[#allocation4 + $0x58] sm:$0xff]
        %v351 = vld [vmem:[#allocation4 + $0x60] sm:$0xff]
        %v352 = vld [vmem:[#allocation4 + $0x68] sm:$0xff]
        %v353 = vld [vmem:[#allocation4 + $0x70] sm:$0xff]
        %v354 = vld [vmem:[#allocation4 + $0x78] sm:$0xff]
        %v355 = vld [vmem:[%s4] sm:$0x1]
        %v357 = vperm.slane %v355, 0
        %359 = vmatpush.msra.mxu0 %v354
        %360 = vmatpush.msra.mxu0 %v353
        %361 = vmatpush.msra.mxu0 %v352
        %362 = vmatpush.msra.mxu0 %v351
        %363 = vmatpush.msra.mxu0 %v350
        %364 = vmatpush.msra.mxu0 %v349
        %365 = vmatpush.msra.mxu0 %v348
        %366 = vmatpush.msra.mxu0 %v347
        %367 = vmatpush.msra.mxu0 %v346
        %368 = vmatpush.msra.mxu0 %v345
        %369 = vmatpush.msra.mxu0 %v344
        %370 = vmatpush.msra.mxu0 %v343
        %371 = vmatpush.msra.mxu0 %v342
        %372 = vmatpush.msra.mxu0 %v341
        %373 = vmatpush.msra.mxu0 %v340
        %374 = vmatpush.msra.mxu0 %v339
        %375 = vmatmul.f32.gmra.mxu0 %v338
        %v376 = vpop.f32.mrf.mxu0
        %v377 = vadd.f32 %v357, %v376
        %378 = vdwg.mxu0
        %379 = vst [vmem:[%s253] sm:$0xff] %v377
        %p380 = scmp.lt.s32.totalorder %s18, 1
        %s381 = scalar_select %p380, %s18, 1
        %s382 = smul.addr %s381, 8
        %s383 = scalar_lea.vmem %s5, %s382
        // Predicated region
        $region49: #{_fake_megatron_mlp_impl.1} parent=39 // pred_check
          %p384 = pneg %p146
        $region50: #{_fake_megatron_mlp_impl.1} parent=39 // pred_check_branch
          %386 = sbr.rel (%p384) target = $region52
        $region51: #{_fake_megatron_mlp_impl.1} parent=39 // pred_region
          _
        $region52: #{_fake_megatron_mlp_impl.1} parent=39 // pred_fallthru
          _
      $region40: #{_fake_megatron_mlp_impl.1} parent=5 // pred_fallthru
        _
      %p387 = scmp.le.s32.totalorder 2, %s13
      // Predicated region
      $region53: #{_fake_megatron_mlp_impl.1} parent=5 // pred_check
        %p388 = pneg %p387
      $region54: #{_fake_megatron_mlp_impl.1} parent=5 // pred_check_branch
        %390 = sbr.rel (%p388) target = $region56
      $region55: #{_fake_megatron_mlp_impl.1} parent=5 // pred_region
        %s391 = ssub.s32 %s13, 2
        // Predicated region
        $region57: #{_fake_megatron_mlp_impl.1} parent=55 // pred_check
          %p392 = pneg %p152
        $region58: #{_fake_megatron_mlp_impl.1} parent=55 // pred_check_branch
          %394 = sbr.rel (%p392) target = $region60
        $region59: #{_fake_megatron_mlp_impl.1} parent=55 // pred_region
          %p395 = scmp.lt.s32.totalorder %s19, 1
          %s396 = scalar_select %p395, %s19, 1
          %s397 = smul.addr %s396, 8
          %s398 = scalar_lea.vmem %s5, %s397
        $region60: #{_fake_megatron_mlp_impl.1} parent=55 // pred_fallthru
          _
      $region56: #{_fake_megatron_mlp_impl.1} parent=5 // pred_fallthru
        _
    $region6: #{_fake_megatron_mlp_impl.1} parent=1 // loop_footer
      %s17 = sadd.s32 1, %s13
    $region7: #{_fake_megatron_mlp_impl.1} parent=1 // loop_footer_branch
      %12 = sbr.rel target = $region3
    $region8: #{_fake_megatron_mlp_impl.1} parent=1 // loop_exit
      _
    %399 = vsyncpa [#allocation3], 1
    %s400 = scalar_lea.sflag [#allocation3], 1
    %401 = vsyncpa %s400, 1
    %402 = vsyncpa [#allocation5], 1

</llo_original>
